<compile_context>
chip_gen: v7x
topology: tpu7x:2x2x1
jax: 0.10.0
libtpu: 0.0.40
codegen_flags: <defaults>
</compile_context>

<pallas_src>
import functools

import numpy as np

import jax
import jax.numpy as jnp
from jax.experimental import pallas as pl
from jax.experimental.pallas import tpu as pltpu


# ----------------------------------------------------------------------------
# Fused kernel: encoder -> (per-group gumbel-softmax) x num_samples -> decoder
# ----------------------------------------------------------------------------
def _vae_fused_kernel(x_ref, noise_ref,
                      ew1_ref, eb1_ref, ew2_ref, eb2_ref,
                      dw1_ref, db1_ref, dw2_ref, db2_ref, perm_ref,
                      xr_ref, z_ref, logits_ref,
                      *, n, m, num_samples, tau):
    inv_tau = 1.0 / tau

    # ---- encoder MLP (once per batch tile) ----
    x = x_ref[...]                                                    # (tB, D)
    h = jnp.dot(x, ew1_ref[...], preferred_element_type=jnp.float32)
    h = jnp.maximum(h + eb1_ref[...], 0.0)
    logits = jnp.dot(h, ew2_ref[...], preferred_element_type=jnp.float32)
    logits = logits + eb2_ref[...]                                    # (tB, n*m)
    logits_ref[...] = logits

    perm = perm_ref[...]                                              # (nm, nm)
    dw1 = dw1_ref[...]
    db1 = db1_ref[...]
    dw2 = dw2_ref[...]
    db2 = db2_ref[...]

    # ---- per-sample relaxed subset sampling + decoder ----
    for s in range(num_samples):                                      # static, small
        y = (logits + noise_ref[s]) * inv_tau                         # (tB, n*m)

        # softmax over each group's m categories (static lane slices)
        parts = []
        for i in range(n):
            yi = y[:, i * m:(i + 1) * m]
            yi = yi - jnp.max(yi, axis=-1, keepdims=True)
            e = jnp.exp(yi)
            inv = pl.reciprocal(jnp.sum(e, axis=-1, keepdims=True), approx=True)
            parts.append(e * inv)
        z_grouped = parts[0] if n == 1 else jnp.concatenate(parts, axis=-1)

        # reproduce torch stack(dim=-1).view interleaving (m-major, n-minor)
        # via an exact 0/1 permutation matmul on the MXU.
        z_int = jnp.dot(z_grouped, perm, preferred_element_type=jnp.float32)
        z_ref[s] = z_int

        # ---- decoder MLP ----
        hd = jnp.dot(z_int, dw1, preferred_element_type=jnp.float32)
        hd = jnp.maximum(hd + db1, 0.0)
        xr = jnp.dot(hd, dw2, preferred_element_type=jnp.float32) + db2
        xr_ref[s] = jax.nn.sigmoid(xr)


# ----------------------------------------------------------------------------
# VAE.forward wrapper (single pallas_call)
# ----------------------------------------------------------------------------
def vae_forward(x, params, gumbel_noise, *, n, m, num_samples, tau):
    """Mirrors VAE.forward.

    x            : (B, D) float32
    gumbel_noise : (num_samples, B, n*m) float32, grouped n-major / m-minor
                   (noise for group i is gumbel_noise[..., i*m:(i+1)*m]).
    Returns (x_recon, z, logits, extra).
    """
    B, D = x.shape
    nm = n * m
    S = num_samples
    H = params["enc_w1"].shape[1]
    assert gumbel_noise.shape == (S, B, nm)

    # batch (row) tiling: keeps weights VMEM-resident while activations stream
    tile_b = B if B <= 128 else 128
    assert B % tile_b == 0, "batch must divide the row tile"
    grid = (B // tile_b,)

    # constant interleave permutation: z_int[:, j] = z_grouped[:, (j%n)*m + j//n]
    src = np.array([(j % n) * m + (j // n) for j in range(nm)], dtype=np.int64)
    perm = jnp.asarray(np.eye(nm, dtype=np.float32)[:, src])          # (nm, nm)

    kern = functools.partial(_vae_fused_kernel, n=n, m=m,
                             num_samples=S, tau=tau)

    def _full(shape):
        # whole array, constant block index -> fetched once, stays in VMEM
        return pl.BlockSpec(shape, lambda i, _s=shape: (0,) * len(_s))

    out_shape = (
        jax.ShapeDtypeStruct((S, B, D), jnp.float32),    # x_recon
        jax.ShapeDtypeStruct((S, B, nm), jnp.float32),   # z
        jax.ShapeDtypeStruct((B, nm), jnp.float32),      # logits
    )
    in_specs = [
        pl.BlockSpec((tile_b, D), lambda i: (i, 0)),           # x
        pl.BlockSpec((S, tile_b, nm), lambda i: (0, i, 0)),    # gumbel noise
        _full(params["enc_w1"].shape), _full(params["enc_b1"].shape),
        _full(params["enc_w2"].shape), _full(params["enc_b2"].shape),
        _full(params["dec_w1"].shape), _full(params["dec_b1"].shape),
        _full(params["dec_w2"].shape), _full(params["dec_b2"].shape),
        _full(perm.shape),
    ]
    out_specs = (
        pl.BlockSpec((S, tile_b, D), lambda i: (0, i, 0)),
        pl.BlockSpec((S, tile_b, nm), lambda i: (0, i, 0)),
        pl.BlockSpec((tile_b, nm), lambda i: (i, 0)),
    )

    x_recon, z, logits = pl.pallas_call(
        kern,
        out_shape=out_shape,
        grid=grid,
        in_specs=in_specs,
        out_specs=out_specs,
        compiler_params=pltpu.CompilerParams(
            dimension_semantics=("parallel",)),
    )(x, gumbel_noise,
      params["enc_w1"], params["enc_b1"], params["enc_w2"], params["enc_b2"],
      params["dec_w1"], params["dec_b1"], params["dec_w2"], params["dec_b2"],
      perm)

    if n == 1:
        # torch n==1 branch keeps (num_samples*B, m) rows un-split
        z = z.reshape(S * B, nm)
        x_recon = x_recon.reshape(S * B, D)

    # TODO(synk): `self.extra` path only fires when the injected subset layer
    # returns a non-None extra; our concrete relaxed sampler returns None.
    extra = None
    return x_recon, z, logits, extra


# ----------------------------------------------------------------------------
# Driver
# ----------------------------------------------------------------------------
if __name__ == "__main__":
    B, D, H = 2, 64, 32          # batch, input dim, hidden dim
    n, m, S = 2, 8, 2            # groups, categories per group, num_samples
    tau = 0.5

    key = jax.random.PRNGKey(0)
    ks = jax.random.split(key, 8)

    params = {
        "enc_w1": 0.1 * jax.random.normal(ks[0], (D, H), jnp.float32),
        "enc_b1": jnp.zeros((1, H), jnp.float32),
        "enc_w2": 0.1 * jax.random.normal(ks[1], (H, n * m), jnp.float32),
        "enc_b2": jnp.zeros((1, n * m), jnp.float32),
        "dec_w1": 0.1 * jax.random.normal(ks[2], (n * m, H), jnp.float32),
        "dec_b1": jnp.zeros((1, H), jnp.float32),
        "dec_w2": 0.1 * jax.random.normal(ks[3], (H, D), jnp.float32),
        "dec_b2": jnp.zeros((1, D), jnp.float32),
    }

    x = jax.random.normal(ks[4], (B, D), jnp.float32)
    # deterministic Gumbel noise for the relaxed subset sampler, grouped n-major
    gumbel_noise = jax.random.gumbel(ks[5], (S, B, n * m), jnp.float32)

    x_recon, z, logits, extra = vae_forward(
        x, params, gumbel_noise, n=n, m=m, num_samples=S, tau=tau)
    jax.block_until_ready((x_recon, z, logits))

    assert x_recon.shape == (S, B, D)
    assert z.shape == (S, B, n * m)
    assert logits.shape == (B, n * m)
    assert bool(jnp.all(jnp.isfinite(x_recon)))
    print("KERNEL_OK")
</pallas_src>

<mosaic_0001>
module attributes {stable_mosaic.version = 11 : i64} {
  func.func @_vae_fused_kernel(%arg0: i32, %arg1: memref<2x64xf32, #tpu.memory_space<vmem>>, %arg2: memref<2x2x16xf32, #tpu.memory_space<vmem>>, %arg3: memref<64x32xf32, #tpu.memory_space<vmem>>, %arg4: memref<1x32xf32, #tpu.memory_space<vmem>>, %arg5: memref<32x16xf32, #tpu.memory_space<vmem>>, %arg6: memref<1x16xf32, #tpu.memory_space<vmem>>, %arg7: memref<16x32xf32, #tpu.memory_space<vmem>>, %arg8: memref<1x32xf32, #tpu.memory_space<vmem>>, %arg9: memref<32x64xf32, #tpu.memory_space<vmem>>, %arg10: memref<1x64xf32, #tpu.memory_space<vmem>>, %arg11: memref<16x16xf32, #tpu.memory_space<vmem>>, %arg12: memref<2x2x64xf32, #tpu.memory_space<vmem>>, %arg13: memref<2x2x16xf32, #tpu.memory_space<vmem>>, %arg14: memref<2x16xf32, #tpu.memory_space<vmem>>) attributes {dimension_semantics = [#tpu.dimension_semantics<parallel>], iteration_bounds = array<i64: 1>, scalar_prefetch = 0 : i64, scratch_operands = 0 : i64, tpu.core_type = #tpu.core_type<tc>, window_params = [{transform_indices = @transform_0, window_bounds = array<i64: 2, 64>}, {transform_indices = @transform_1, window_bounds = array<i64: 2, 2, 16>}, {pipeline_mode = #tpu.pipeline_mode<synchronous>, transform_indices = @transform_2, window_bounds = array<i64: 64, 32>}, {pipeline_mode = #tpu.pipeline_mode<synchronous>, transform_indices = @transform_3, window_bounds = array<i64: 1, 32>}, {pipeline_mode = #tpu.pipeline_mode<synchronous>, transform_indices = @transform_4, window_bounds = array<i64: 32, 16>}, {pipeline_mode = #tpu.pipeline_mode<synchronous>, transform_indices = @transform_5, window_bounds = array<i64: 1, 16>}, {pipeline_mode = #tpu.pipeline_mode<synchronous>, transform_indices = @transform_6, window_bounds = array<i64: 16, 32>}, {pipeline_mode = #tpu.pipeline_mode<synchronous>, transform_indices = @transform_7, window_bounds = array<i64: 1, 32>}, {pipeline_mode = #tpu.pipeline_mode<synchronous>, transform_indices = @transform_8, window_bounds = array<i64: 32, 64>}, {pipeline_mode = #tpu.pipeline_mode<synchronous>, transform_indices = @transform_9, window_bounds = array<i64: 1, 64>}, {pipeline_mode = #tpu.pipeline_mode<synchronous>, transform_indices = @transform_10, window_bounds = array<i64: 16, 16>}, {transform_indices = @transform_11, window_bounds = array<i64: 2, 2, 64>}, {transform_indices = @transform_12, window_bounds = array<i64: 2, 2, 16>}, {transform_indices = @transform_13, window_bounds = array<i64: 2, 16>}]} {
    %c0 = arith.constant 0 : index
    %c0_0 = arith.constant 0 : index
    %0 = vector.load %arg1[%c0, %c0_0] : memref<2x64xf32, #tpu.memory_space<vmem>>, vector<2x64xf32>
    %c0_1 = arith.constant 0 : index
    %c0_2 = arith.constant 0 : index
    %1 = vector.load %arg3[%c0_1, %c0_2] : memref<64x32xf32, #tpu.memory_space<vmem>>, vector<64x32xf32>
    %cst = arith.constant dense<0.000000e+00> : vector<2x32xf32>
    %2 = tpu.matmul %0, %1, %cst {dimension_numbers = #tpu.dot_dimension_numbers<[1], [0], [0], [1], [0, 0, 1, 1], [], []>} : vector<2x64xf32>, vector<64x32xf32>, vector<2x32xf32> -> vector<2x32xf32>
    %c0_3 = arith.constant 0 : index
    %c0_4 = arith.constant 0 : index
    %3 = vector.load %arg4[%c0_3, %c0_4] : memref<1x32xf32, #tpu.memory_space<vmem>>, vector<1x32xf32>
    %4 = vector.broadcast %3 : vector<1x32xf32> to vector<2x32xf32>
    %5 = arith.addf %2, %4 : vector<2x32xf32>
    %cst_5 = arith.constant 0.000000e+00 : f32
    %6 = vector.broadcast %cst_5 : f32 to vector<2x32xf32>
    %7 = arith.maximumf %5, %6 : vector<2x32xf32>
    %c0_6 = arith.constant 0 : index
    %c0_7 = arith.constant 0 : index
    %8 = vector.load %arg5[%c0_6, %c0_7] : memref<32x16xf32, #tpu.memory_space<vmem>>, vector<32x16xf32>
    %cst_8 = arith.constant dense<0.000000e+00> : vector<2x16xf32>
    %9 = tpu.matmul %7, %8, %cst_8 {dimension_numbers = #tpu.dot_dimension_numbers<[1], [0], [0], [1], [0, 0, 1, 1], [], []>} : vector<2x32xf32>, vector<32x16xf32>, vector<2x16xf32> -> vector<2x16xf32>
    %c0_9 = arith.constant 0 : index
    %c0_10 = arith.constant 0 : index
    %10 = vector.load %arg6[%c0_9, %c0_10] : memref<1x16xf32, #tpu.memory_space<vmem>>, vector<1x16xf32>
    %11 = vector.broadcast %10 : vector<1x16xf32> to vector<2x16xf32>
    %12 = arith.addf %9, %11 : vector<2x16xf32>
    %c0_11 = arith.constant 0 : index
    %c0_12 = arith.constant 0 : index
    %13 = vector.load %arg14[%c0_11, %c0_12] : memref<2x16xf32, #tpu.memory_space<vmem>>, vector<2x16xf32>
    tpu.vector_store %arg14[%c0_11, %c0_12], %12 {strides = array<i32>} : memref<2x16xf32, #tpu.memory_space<vmem>>, vector<2x16xf32>,
    %c0_13 = arith.constant 0 : index
    %c0_14 = arith.constant 0 : index
    %14 = vector.load %arg11[%c0_13, %c0_14] : memref<16x16xf32, #tpu.memory_space<vmem>>, vector<16x16xf32>
    %c0_15 = arith.constant 0 : index
    %c0_16 = arith.constant 0 : index
    %15 = vector.load %arg7[%c0_15, %c0_16] : memref<16x32xf32, #tpu.memory_space<vmem>>, vector<16x32xf32>
    %c0_17 = arith.constant 0 : index
    %c0_18 = arith.constant 0 : index
    %16 = vector.load %arg8[%c0_17, %c0_18] : memref<1x32xf32, #tpu.memory_space<vmem>>, vector<1x32xf32>
    %c0_19 = arith.constant 0 : index
    %c0_20 = arith.constant 0 : index
    %17 = vector.load %arg9[%c0_19, %c0_20] : memref<32x64xf32, #tpu.memory_space<vmem>>, vector<32x64xf32>
    %c0_21 = arith.constant 0 : index
    %c0_22 = arith.constant 0 : index
    %18 = vector.load %arg10[%c0_21, %c0_22] : memref<1x64xf32, #tpu.memory_space<vmem>>, vector<1x64xf32>
    %c0_23 = arith.constant 0 : index
    %c0_24 = arith.constant 0 : index
    %c0_25 = arith.constant 0 : index
    %19 = vector.load %arg2[%c0_23, %c0_24, %c0_25] : memref<2x2x16xf32, #tpu.memory_space<vmem>>, vector<1x2x16xf32>
    %20 = vector.shape_cast %19 : vector<1x2x16xf32> to vector<2x16xf32>
    %21 = arith.addf %12, %20 : vector<2x16xf32>
    %cst_26 = arith.constant 2.000000e+00 : f32
    %22 = vector.broadcast %cst_26 : f32 to vector<2x16xf32>
    %23 = arith.mulf %21, %22 : vector<2x16xf32>
    %24 = vector.extract_strided_slice %23 {offsets = [0, 0], sizes = [2, 8], strides = [1, 1]} : vector<2x16xf32> to vector<2x8xf32>
    %cst_27 = arith.constant dense<0xFF800000> : vector<2xf32>
    %25 = vector.multi_reduction <maximumf>, %24, %cst_27 [1] : vector<2x8xf32> to vector<2xf32>
    %26 = vector.shape_cast %25 : vector<2xf32> to vector<2x1xf32>
    %27 = vector.broadcast %26 : vector<2x1xf32> to vector<2x8xf32>
    %28 = arith.subf %24, %27 : vector<2x8xf32>
    %29 = math.exp %28 : vector<2x8xf32>
    %cst_28 = arith.constant dense<0.000000e+00> : vector<2xf32>
    %30 = vector.multi_reduction <add>, %29, %cst_28 [1] : vector<2x8xf32> to vector<2xf32>
    %31 = vector.shape_cast %30 : vector<2xf32> to vector<2x1xf32>
    %32 = tpu.reciprocal %31 {approx = true} : vector<2x1xf32> -> vector<2x1xf32>
    %33 = vector.broadcast %32 : vector<2x1xf32> to vector<2x8xf32>
    %34 = arith.mulf %29, %33 : vector<2x8xf32>
    %35 = vector.extract_strided_slice %23 {offsets = [0, 8], sizes = [2, 8], strides = [1, 1]} : vector<2x16xf32> to vector<2x8xf32>
    %cst_29 = arith.constant dense<0xFF800000> : vector<2xf32>
    %36 = vector.multi_reduction <maximumf>, %35, %cst_29 [1] : vector<2x8xf32> to vector<2xf32>
    %37 = vector.shape_cast %36 : vector<2xf32> to vector<2x1xf32>
    %38 = vector.broadcast %37 : vector<2x1xf32> to vector<2x8xf32>
    %39 = arith.subf %35, %38 : vector<2x8xf32>
    %40 = math.exp %39 : vector<2x8xf32>
    %cst_30 = arith.constant dense<0.000000e+00> : vector<2xf32>
    %41 = vector.multi_reduction <add>, %40, %cst_30 [1] : vector<2x8xf32> to vector<2xf32>
    %42 = vector.shape_cast %41 : vector<2xf32> to vector<2x1xf32>
    %43 = tpu.reciprocal %42 {approx = true} : vector<2x1xf32> -> vector<2x1xf32>
    %44 = vector.broadcast %43 : vector<2x1xf32> to vector<2x8xf32>
    %45 = arith.mulf %40, %44 : vector<2x8xf32>
    %46 = tpu.concatenate %34, %45 in 1 : vector<2x8xf32>, vector<2x8xf32> -> vector<2x16xf32>
    %cst_31 = arith.constant dense<0.000000e+00> : vector<2x16xf32>
    %47 = tpu.matmul %46, %14, %cst_31 {dimension_numbers = #tpu.dot_dimension_numbers<[1], [0], [0], [1], [0, 0, 1, 1], [], []>} : vector<2x16xf32>, vector<16x16xf32>, vector<2x16xf32> -> vector<2x16xf32>
    %c0_32 = arith.constant 0 : index
    %c0_33 = arith.constant 0 : index
    %c0_34 = arith.constant 0 : index
    %48 = vector.load %arg13[%c0_32, %c0_33, %c0_34] : memref<2x2x16xf32, #tpu.memory_space<vmem>>, vector<1x2x16xf32>
    %49 = vector.shape_cast %48 : vector<1x2x16xf32> to vector<2x16xf32>
    %50 = vector.shape_cast %47 : vector<2x16xf32> to vector<1x2x16xf32>
    tpu.vector_store %arg13[%c0_32, %c0_33, %c0_34], %50 {strides = array<i32>} : memref<2x2x16xf32, #tpu.memory_space<vmem>>, vector<1x2x16xf32>,
    %cst_35 = arith.constant dense<0.000000e+00> : vector<2x32xf32>
    %51 = tpu.matmul %47, %15, %cst_35 {dimension_numbers = #tpu.dot_dimension_numbers<[1], [0], [0], [1], [0, 0, 1, 1], [], []>} : vector<2x16xf32>, vector<16x32xf32>, vector<2x32xf32> -> vector<2x32xf32>
    %52 = vector.broadcast %16 : vector<1x32xf32> to vector<2x32xf32>
    %53 = arith.addf %51, %52 : vector<2x32xf32>
    %cst_36 = arith.constant 0.000000e+00 : f32
    %54 = vector.broadcast %cst_36 : f32 to vector<2x32xf32>
    %55 = arith.maximumf %53, %54 : vector<2x32xf32>
    %cst_37 = arith.constant dense<0.000000e+00> : vector<2x64xf32>
    %56 = tpu.matmul %55, %17, %cst_37 {dimension_numbers = #tpu.dot_dimension_numbers<[1], [0], [0], [1], [0, 0, 1, 1], [], []>} : vector<2x32xf32>, vector<32x64xf32>, vector<2x64xf32> -> vector<2x64xf32>
    %57 = vector.broadcast %18 : vector<1x64xf32> to vector<2x64xf32>
    %58 = arith.addf %56, %57 : vector<2x64xf32>
    %59 = arith.negf %58 : vector<2x64xf32>
    %60 = math.exp %59 : vector<2x64xf32>
    %cst_38 = arith.constant 1.000000e+00 : f32
    %61 = vector.broadcast %cst_38 : f32 to vector<2x64xf32>
    %62 = arith.addf %61, %60 : vector<2x64xf32>
    %63 = arith.divf %61, %62 : vector<2x64xf32>
    %c0_39 = arith.constant 0 : index
    %c0_40 = arith.constant 0 : index
    %c0_41 = arith.constant 0 : index
    %64 = vector.load %arg12[%c0_39, %c0_40, %c0_41] : memref<2x2x64xf32, #tpu.memory_space<vmem>>, vector<1x2x64xf32>
    %65 = vector.shape_cast %64 : vector<1x2x64xf32> to vector<2x64xf32>
    %66 = vector.shape_cast %63 : vector<2x64xf32> to vector<1x2x64xf32>
    tpu.vector_store %arg12[%c0_39, %c0_40, %c0_41], %66 {strides = array<i32>} : memref<2x2x64xf32, #tpu.memory_space<vmem>>, vector<1x2x64xf32>,
    %c1 = arith.constant 1 : index
    %c0_42 = arith.constant 0 : index
    %c0_43 = arith.constant 0 : index
    %67 = vector.load %arg2[%c1, %c0_42, %c0_43] : memref<2x2x16xf32, #tpu.memory_space<vmem>>, vector<1x2x16xf32>
    %68 = vector.shape_cast %67 : vector<1x2x16xf32> to vector<2x16xf32>
    %69 = arith.addf %12, %68 : vector<2x16xf32>
    %cst_44 = arith.constant 2.000000e+00 : f32
    %70 = vector.broadcast %cst_44 : f32 to vector<2x16xf32>
    %71 = arith.mulf %69, %70 : vector<2x16xf32>
    %72 = vector.extract_strided_slice %71 {offsets = [0, 0], sizes = [2, 8], strides = [1, 1]} : vector<2x16xf32> to vector<2x8xf32>
    %cst_45 = arith.constant dense<0xFF800000> : vector<2xf32>
    %73 = vector.multi_reduction <maximumf>, %72, %cst_45 [1] : vector<2x8xf32> to vector<2xf32>
    %74 = vector.shape_cast %73 : vector<2xf32> to vector<2x1xf32>
    %75 = vector.broadcast %74 : vector<2x1xf32> to vector<2x8xf32>
    %76 = arith.subf %72, %75 : vector<2x8xf32>
    %77 = math.exp %76 : vector<2x8xf32>
    %cst_46 = arith.constant dense<0.000000e+00> : vector<2xf32>
    %78 = vector.multi_reduction <add>, %77, %cst_46 [1] : vector<2x8xf32> to vector<2xf32>
    %79 = vector.shape_cast %78 : vector<2xf32> to vector<2x1xf32>
    %80 = tpu.reciprocal %79 {approx = true} : vector<2x1xf32> -> vector<2x1xf32>
    %81 = vector.broadcast %80 : vector<2x1xf32> to vector<2x8xf32>
    %82 = arith.mulf %77, %81 : vector<2x8xf32>
    %83 = vector.extract_strided_slice %71 {offsets = [0, 8], sizes = [2, 8], strides = [1, 1]} : vector<2x16xf32> to vector<2x8xf32>
    %cst_47 = arith.constant dense<0xFF800000> : vector<2xf32>
    %84 = vector.multi_reduction <maximumf>, %83, %cst_47 [1] : vector<2x8xf32> to vector<2xf32>
    %85 = vector.shape_cast %84 : vector<2xf32> to vector<2x1xf32>
    %86 = vector.broadcast %85 : vector<2x1xf32> to vector<2x8xf32>
    %87 = arith.subf %83, %86 : vector<2x8xf32>
    %88 = math.exp %87 : vector<2x8xf32>
    %cst_48 = arith.constant dense<0.000000e+00> : vector<2xf32>
    %89 = vector.multi_reduction <add>, %88, %cst_48 [1] : vector<2x8xf32> to vector<2xf32>
    %90 = vector.shape_cast %89 : vector<2xf32> to vector<2x1xf32>
    %91 = tpu.reciprocal %90 {approx = true} : vector<2x1xf32> -> vector<2x1xf32>
    %92 = vector.broadcast %91 : vector<2x1xf32> to vector<2x8xf32>
    %93 = arith.mulf %88, %92 : vector<2x8xf32>
    %94 = tpu.concatenate %82, %93 in 1 : vector<2x8xf32>, vector<2x8xf32> -> vector<2x16xf32>
    %cst_49 = arith.constant dense<0.000000e+00> : vector<2x16xf32>
    %95 = tpu.matmul %94, %14, %cst_49 {dimension_numbers = #tpu.dot_dimension_numbers<[1], [0], [0], [1], [0, 0, 1, 1], [], []>} : vector<2x16xf32>, vector<16x16xf32>, vector<2x16xf32> -> vector<2x16xf32>
    %c1_50 = arith.constant 1 : index
    %c0_51 = arith.constant 0 : index
    %c0_52 = arith.constant 0 : index
    %96 = vector.load %arg13[%c1_50, %c0_51, %c0_52] : memref<2x2x16xf32, #tpu.memory_space<vmem>>, vector<1x2x16xf32>
    %97 = vector.shape_cast %96 : vector<1x2x16xf32> to vector<2x16xf32>
    %98 = vector.shape_cast %95 : vector<2x16xf32> to vector<1x2x16xf32>
    tpu.vector_store %arg13[%c1_50, %c0_51, %c0_52], %98 {strides = array<i32>} : memref<2x2x16xf32, #tpu.memory_space<vmem>>, vector<1x2x16xf32>,
    %cst_53 = arith.constant dense<0.000000e+00> : vector<2x32xf32>
    %99 = tpu.matmul %95, %15, %cst_53 {dimension_numbers = #tpu.dot_dimension_numbers<[1], [0], [0], [1], [0, 0, 1, 1], [], []>} : vector<2x16xf32>, vector<16x32xf32>, vector<2x32xf32> -> vector<2x32xf32>
    %100 = vector.broadcast %16 : vector<1x32xf32> to vector<2x32xf32>
    %101 = arith.addf %99, %100 : vector<2x32xf32>
    %cst_54 = arith.constant 0.000000e+00 : f32
    %102 = vector.broadcast %cst_54 : f32 to vector<2x32xf32>
    %103 = arith.maximumf %101, %102 : vector<2x32xf32>
    %cst_55 = arith.constant dense<0.000000e+00> : vector<2x64xf32>
    %104 = tpu.matmul %103, %17, %cst_55 {dimension_numbers = #tpu.dot_dimension_numbers<[1], [0], [0], [1], [0, 0, 1, 1], [], []>} : vector<2x32xf32>, vector<32x64xf32>, vector<2x64xf32> -> vector<2x64xf32>
    %105 = vector.broadcast %18 : vector<1x64xf32> to vector<2x64xf32>
    %106 = arith.addf %104, %105 : vector<2x64xf32>
    %107 = arith.negf %106 : vector<2x64xf32>
    %108 = math.exp %107 : vector<2x64xf32>
    %cst_56 = arith.constant 1.000000e+00 : f32
    %109 = vector.broadcast %cst_56 : f32 to vector<2x64xf32>
    %110 = arith.addf %109, %108 : vector<2x64xf32>
    %111 = arith.divf %109, %110 : vector<2x64xf32>
    %c1_57 = arith.constant 1 : index
    %c0_58 = arith.constant 0 : index
    %c0_59 = arith.constant 0 : index
    %112 = vector.load %arg12[%c1_57, %c0_58, %c0_59] : memref<2x2x64xf32, #tpu.memory_space<vmem>>, vector<1x2x64xf32>
    %113 = vector.shape_cast %112 : vector<1x2x64xf32> to vector<2x64xf32>
    %114 = vector.shape_cast %111 : vector<2x64xf32> to vector<1x2x64xf32>
    tpu.vector_store %arg12[%c1_57, %c0_58, %c0_59], %114 {strides = array<i32>} : memref<2x2x64xf32, #tpu.memory_space<vmem>>, vector<1x2x64xf32>,
    return
  }
  func.func @transform_0(%arg0: i32) -> (i32, i32) {
    %c0_i32 = arith.constant 0 : i32
    %c0_i32_0 = arith.constant 0 : i32
    return %arg0, %c0_i32 : i32, i32
  }
  func.func @transform_1(%arg0: i32) -> (i32, i32, i32) {
    %c0_i32 = arith.constant 0 : i32
    %c0_i32_0 = arith.constant 0 : i32
    %c0_i32_1 = arith.constant 0 : i32
    return %c0_i32, %arg0, %c0_i32_0 : i32, i32, i32
  }
  func.func @transform_2(%arg0: i32) -> (i32, i32) {
    %c0_i32 = arith.constant 0 : i32
    %c0_i32_0 = arith.constant 0 : i32
    %c0_i32_1 = arith.constant 0 : i32
    return %c0_i32, %c0_i32_0 : i32, i32
  }
  func.func @transform_3(%arg0: i32) -> (i32, i32) {
    %c0_i32 = arith.constant 0 : i32
    %c0_i32_0 = arith.constant 0 : i32
    %c0_i32_1 = arith.constant 0 : i32
    return %c0_i32, %c0_i32_0 : i32, i32
  }
  func.func @transform_4(%arg0: i32) -> (i32, i32) {
    %c0_i32 = arith.constant 0 : i32
    %c0_i32_0 = arith.constant 0 : i32
    %c0_i32_1 = arith.constant 0 : i32
    return %c0_i32, %c0_i32_0 : i32, i32
  }
  func.func @transform_5(%arg0: i32) -> (i32, i32) {
    %c0_i32 = arith.constant 0 : i32
    %c0_i32_0 = arith.constant 0 : i32
    %c0_i32_1 = arith.constant 0 : i32
    return %c0_i32, %c0_i32_0 : i32, i32
  }
  func.func @transform_6(%arg0: i32) -> (i32, i32) {
    %c0_i32 = arith.constant 0 : i32
    %c0_i32_0 = arith.constant 0 : i32
    %c0_i32_1 = arith.constant 0 : i32
    return %c0_i32, %c0_i32_0 : i32, i32
  }
  func.func @transform_7(%arg0: i32) -> (i32, i32) {
    %c0_i32 = arith.constant 0 : i32
    %c0_i32_0 = arith.constant 0 : i32
    %c0_i32_1 = arith.constant 0 : i32
    return %c0_i32, %c0_i32_0 : i32, i32
  }
  func.func @transform_8(%arg0: i32) -> (i32, i32) {
    %c0_i32 = arith.constant 0 : i32
    %c0_i32_0 = arith.constant 0 : i32
    %c0_i32_1 = arith.constant 0 : i32
    return %c0_i32, %c0_i32_0 : i32, i32
  }
  func.func @transform_9(%arg0: i32) -> (i32, i32) {
    %c0_i32 = arith.constant 0 : i32
    %c0_i32_0 = arith.constant 0 : i32
    %c0_i32_1 = arith.constant 0 : i32
    return %c0_i32, %c0_i32_0 : i32, i32
  }
  func.func @transform_10(%arg0: i32) -> (i32, i32) {
    %c0_i32 = arith.constant 0 : i32
    %c0_i32_0 = arith.constant 0 : i32
    %c0_i32_1 = arith.constant 0 : i32
    return %c0_i32, %c0_i32_0 : i32, i32
  }
  func.func @transform_11(%arg0: i32) -> (i32, i32, i32) {
    %c0_i32 = arith.constant 0 : i32
    %c0_i32_0 = arith.constant 0 : i32
    %c0_i32_1 = arith.constant 0 : i32
    return %c0_i32, %arg0, %c0_i32_0 : i32, i32, i32
  }
  func.func @transform_12(%arg0: i32) -> (i32, i32, i32) {
    %c0_i32 = arith.constant 0 : i32
    %c0_i32_0 = arith.constant 0 : i32
    %c0_i32_1 = arith.constant 0 : i32
    return %c0_i32, %arg0, %c0_i32_0 : i32, i32, i32
  }
  func.func @transform_13(%arg0: i32) -> (i32, i32) {
    %c0_i32 = arith.constant 0 : i32
    %c0_i32_0 = arith.constant 0 : i32
    return %arg0, %c0_i32 : i32, i32
  }
}

</mosaic_0001>

<llo_original>
// kernel: tpu_custom_call.1
$region0: #{tpu_custom_call.1}
  #allocation0 [shape = 'u32[]', space=smem, size = 0x4, offset = 0x4, fixed_abs, tag = 'smem constant byte address 0x4 - core index']
  #allocation1 [shape = 'u32[144,128]{1,0:T(1,128)}', space=vmem, size = 0x12000, scoped, tag = 'internal scratch']
  %s0 = inlined_call_operand.vmem [shape: f32[2,64], index: 0, kind: input, shape index: {}]
  %s1 = inlined_call_operand.vmem [shape: f32[2,2,16], index: 1, kind: input, shape index: {}]
  %s2 = inlined_call_operand.vmem [shape: f32[64,32], index: 2, kind: input, shape index: {}]
  %s3 = inlined_call_operand.vmem [shape: f32[1,32], index: 3, kind: input, shape index: {}]
  %s4 = inlined_call_operand.vmem [shape: f32[32,16], index: 4, kind: input, shape index: {}]
  %s5 = inlined_call_operand.vmem [shape: f32[1,16], index: 5, kind: input, shape index: {}]
  %s6 = inlined_call_operand.vmem [shape: f32[16,32], index: 6, kind: input, shape index: {}]
  %s7 = inlined_call_operand.vmem [shape: f32[1,32], index: 7, kind: input, shape index: {}]
  %s8 = inlined_call_operand.vmem [shape: f32[32,64], index: 8, kind: input, shape index: {}]
  %s9 = inlined_call_operand.vmem [shape: f32[1,64], index: 9, kind: input, shape index: {}]
  %s10 = inlined_call_operand.vmem [shape: f32[16,16], index: 10, kind: input, shape index: {}]
  %s11 = inlined_call_operand.hbm [shape: f32[2,2,64], index: 11, kind: output, shape index: {0}]
  %s12 = inlined_call_operand.hbm [shape: f32[2,2,16], index: 12, kind: output, shape index: {1}]
  %s13 = inlined_call_operand.hbm [shape: f32[2,16], index: 13, kind: output, shape index: {2}]
  %14 = xla_tuple %s11, %s12, %s13
  %s15 = sld [smem:[#allocation0]]
  $region70: #{tpu_custom_call.1} parent=0
    _
  %s17 = ssub.s32 1, %s15
  %s18 = scalar_select 0, %s17, %s15
  $region1: #{tpu_custom_call.1} parent=0
    #allocation2 [shape = 'u8[2048]{0}', space=vmem, size = 0x800, scoped, tag = 'output window, operand 0, single buffered']
    #allocation3 [shape = 's32[1]{0}', space=sflag, size = 0x4, scoped, tag = 'scoped memory for tpu_custom_call.1']
    #allocation4 [shape = 'u8[2048]{0}', space=vmem, size = 0x800, scoped, tag = 'output window, operand 1, single buffered']
    #allocation5 [shape = 's32[1]{0}', space=sflag, size = 0x4, scoped, tag = 'scoped memory for tpu_custom_call.1']
    #allocation6 [shape = 'u8[1024]{0}', space=vmem, size = 0x400, scoped, tag = 'output window, operand 2, single buffered']
    %19 = vsyncpa [#allocation3], 0
    %20 = vsyncpa [#allocation5], 0
    // Predicated region
    $region2: #{tpu_custom_call.1} parent=1 // pred_check
      _
    $region3: #{tpu_custom_call.1} parent=1 // pred_check_branch
      %22 = sbr.rel (0) target = $region5
    $region4: #{tpu_custom_call.1} parent=1 // pred_region
      _
    $region5: #{tpu_custom_call.1} parent=1 // pred_fallthru
      _
    // Predicated region
    $region6: #{tpu_custom_call.1} parent=1 // pred_check
      _
    $region7: #{tpu_custom_call.1} parent=1 // pred_check_branch
      %24 = sbr.rel (0) target = $region9
    $region8: #{tpu_custom_call.1} parent=1 // pred_region
      _
    $region9: #{tpu_custom_call.1} parent=1 // pred_fallthru
      _
    // Predicated region
    $region10: #{tpu_custom_call.1} parent=1 // pred_check
      _
    $region11: #{tpu_custom_call.1} parent=1 // pred_check_branch
      %26 = sbr.rel (0) target = $region13
    $region12: #{tpu_custom_call.1} parent=1 // pred_region
      _
    $region13: #{tpu_custom_call.1} parent=1 // pred_fallthru
      _
    // Predicated region
    $region14: #{tpu_custom_call.1} parent=1 // pred_check
      _
    $region15: #{tpu_custom_call.1} parent=1 // pred_check_branch
      %28 = sbr.rel (0) target = $region17
    $region16: #{tpu_custom_call.1} parent=1 // pred_region
      _
    $region17: #{tpu_custom_call.1} parent=1 // pred_fallthru
      _
    // Predicated region
    $region18: #{tpu_custom_call.1} parent=1 // pred_check
      _
    $region19: #{tpu_custom_call.1} parent=1 // pred_check_branch
      %30 = sbr.rel (0) target = $region21
    $region20: #{tpu_custom_call.1} parent=1 // pred_region
      _
    $region21: #{tpu_custom_call.1} parent=1 // pred_fallthru
      _
    // Predicated region
    $region22: #{tpu_custom_call.1} parent=1 // pred_check
      _
    $region23: #{tpu_custom_call.1} parent=1 // pred_check_branch
      %32 = sbr.rel (0) target = $region25
    $region24: #{tpu_custom_call.1} parent=1 // pred_region
      _
    $region25: #{tpu_custom_call.1} parent=1 // pred_fallthru
      _
    // Predicated region
    $region26: #{tpu_custom_call.1} parent=1 // pred_check
      _
    $region27: #{tpu_custom_call.1} parent=1 // pred_check_branch
      %34 = sbr.rel (0) target = $region29
    $region28: #{tpu_custom_call.1} parent=1 // pred_region
      _
    $region29: #{tpu_custom_call.1} parent=1 // pred_fallthru
      _
    // Predicated region
    $region30: #{tpu_custom_call.1} parent=1 // pred_check
      _
    $region31: #{tpu_custom_call.1} parent=1 // pred_check_branch
      %36 = sbr.rel (0) target = $region33
    $region32: #{tpu_custom_call.1} parent=1 // pred_region
      _
    $region33: #{tpu_custom_call.1} parent=1 // pred_fallthru
      _
    // Predicated region
    $region34: #{tpu_custom_call.1} parent=1 // pred_check
      _
    $region35: #{tpu_custom_call.1} parent=1 // pred_check_branch
      %38 = sbr.rel (0) target = $region37
    $region36: #{tpu_custom_call.1} parent=1 // pred_region
      _
    $region37: #{tpu_custom_call.1} parent=1 // pred_fallthru
      _
    // Predicated region
    $region38: #{tpu_custom_call.1} parent=1 // pred_check
      _
    $region39: #{tpu_custom_call.1} parent=1 // pred_check_branch
      %40 = sbr.rel (0) target = $region41
    $region40: #{tpu_custom_call.1} parent=1 // pred_region
      _
    $region41: #{tpu_custom_call.1} parent=1 // pred_fallthru
      _
    // Predicated region
    $region42: #{tpu_custom_call.1} parent=1 // pred_check
      _
    $region43: #{tpu_custom_call.1} parent=1 // pred_check_branch
      %42 = sbr.rel (0) target = $region45
    $region44: #{tpu_custom_call.1} parent=1 // pred_region
      _
    $region45: #{tpu_custom_call.1} parent=1 // pred_fallthru
      _
    %v43 = vld [vmem:[%s0] sm:$0x3]
    %v44 = vld [vmem:[%s2] sm:$0xff]
    %v45 = vld [vmem:[%s2 + $0x8] sm:$0xff]
    %v46 = vld [vmem:[%s2 + $0x10] sm:$0xff]
    %v47 = vld [vmem:[%s2 + $0x18] sm:$0xff]
    %v48 = vld [vmem:[%s2 + $0x20] sm:$0xff]
    %v49 = vld [vmem:[%s2 + $0x28] sm:$0xff]
    %v50 = vld [vmem:[%s2 + $0x30] sm:$0xff]
    %v51 = vld [vmem:[%s2 + $0x38] sm:$0xff]
    %v52 = vld [vmem:[%s3] sm:$0x1]
    %v54 = vlaneseq
    %v55 = vshrl.u32 %v54, 7
    %v56 = vsub.s32 0, %v55
    %v57 = vrot.slane %v52, %v56
    %vm59 = vcmask 523264
    %v61 = vsel %vm59, %v43, 0
    %63 = vmatprep.subr.mxu0 0.0
    %64 = vmatpush1.msra.mxu0 %v44
    %65 = vmatprep.subr.mxu0 0.0
    %66 = vmatpush1.msra.mxu0 %v45
    %67 = vmatprep.subr.mxu0 0.0
    %68 = vmatpush1.msra.mxu0 %v46
    %69 = vmatprep.subr.mxu0 0.0
    %70 = vmatpush1.msra.mxu0 %v47
    %71 = vmatprep.subr.mxu0 0.0
    %72 = vmatpush1.msra.mxu0 %v48
    %73 = vmatprep.subr.mxu0 0.0
    %74 = vmatpush1.msra.mxu0 %v49
    %75 = vmatprep.subr.mxu0 0.0
    %76 = vmatpush1.msra.mxu0 %v50
    %77 = vmatprep.subr.mxu0 0.0
    %78 = vmatpush1.msra.mxu0 %v51
    %79 = vmatprep.subr.mxu0 0.0
    %80 = vmatpush1.msra.mxu0 0.0
    %81 = vmatprep.subr.mxu0 0.0
    %82 = vmatpush1.msra.mxu0 0.0
    %83 = vmatprep.subr.mxu0 0.0
    %84 = vmatpush1.msra.mxu0 0.0
    %85 = vmatprep.subr.mxu0 0.0
    %86 = vmatpush1.msra.mxu0 0.0
    %87 = vmatprep.subr.mxu0 0.0
    %88 = vmatpush1.msra.mxu0 0.0
    %89 = vmatprep.subr.mxu0 0.0
    %90 = vmatpush1.msra.mxu0 0.0
    %91 = vmatprep.subr.mxu0 0.0
    %92 = vmatpush1.msra.mxu0 0.0
    %93 = vmatprep.subr.mxu0 0.0
    %94 = vmatpush1.msra.mxu0 0.0
    %95 = vmatprep.subr.mxu0 0.0
    %96 = vmatpush1.msra.mxu0 0.0
    %97 = vmatprep.subr.mxu0 0.0
    %98 = vmatpush1.msra.mxu0 0.0
    %99 = vmatprep.subr.mxu0 0.0
    %100 = vmatpush1.msra.mxu0 0.0
    %101 = vmatprep.subr.mxu0 0.0
    %102 = vmatpush1.msra.mxu0 0.0
    %103 = vmatprep.subr.mxu0 0.0
    %104 = vmatpush1.msra.mxu0 0.0
    %105 = vmatprep.subr.mxu0 0.0
    %106 = vmatpush1.msra.mxu0 0.0
    %107 = vmatprep.subr.mxu0 0.0
    %108 = vmatpush1.msra.mxu0 0.0
    %109 = vmatprep.subr.mxu0 0.0
    %110 = vmatpush1.msra.mxu0 0.0
    %111 = vmatprep.subr.mxu0 0.0
    %112 = vmatpush1.msra.mxu0 0.0
    %113 = vmatprep.subr.mxu0 0.0
    %114 = vmatpush1.msra.mxu0 0.0
    %115 = vmatprep.subr.mxu0 0.0
    %116 = vmatpush1.msra.mxu0 0.0
    %117 = vmatprep.subr.mxu0 0.0
    %118 = vmatpush1.msra.mxu0 0.0
    %119 = vmatprep.subr.mxu0 0.0
    %120 = vmatpush1.msra.mxu0 0.0
    %121 = vmatprep.subr.mxu0 0.0
    %122 = vmatpush1.msra.mxu0 0.0
    %123 = vmatprep.subr.mxu0 0.0
    %124 = vmatpush1.msra.mxu0 0.0
    %125 = vmatprep.subr.mxu0 0.0
    %126 = vmatpush1.msra.mxu0 0.0
    %127 = vmatprep.mubr.f32.mxu0 0.0
    %128 = vmatmul.mubr.f32.gmra.mrb[0].mxu0 %v61
    %v129 = vpop.f32.mrb[0].mxu0
    %v130 = vadd.f32 %v57, %v129
    %v131 = vpop.f32.mrb[0].mxu0
    %132 = vdwg.mxu0
    %v133 = vmax.f32 %v130, 0.0
    %v134 = vld [vmem:[%s4] sm:$0xff]
    %v135 = vld [vmem:[%s4 + $0x8] sm:$0xff]
    %v136 = vld [vmem:[%s4 + $0x10] sm:$0xff]
    %v137 = vld [vmem:[%s4 + $0x18] sm:$0xff]
    %v138 = vld [vmem:[%s5] sm:$0x1]
    %v140 = vlaneseq
    %v141 = vshrl.u32 %v140, 7
    %v142 = vsub.s32 0, %v141
    %v143 = vrot.slane %v138, %v142
    %vm145 = vcmask 261120
    %v147 = vsel %vm145, %v133, 0
    %149 = vmatprep.subr.mxu0 0.0
    %150 = vmatpush1.msra.mxu0 %v134
    %151 = vmatprep.subr.mxu0 0.0
    %152 = vmatpush1.msra.mxu0 %v135
    %153 = vmatprep.subr.mxu0 0.0
    %154 = vmatpush1.msra.mxu0 %v136
    %155 = vmatprep.subr.mxu0 0.0
    %156 = vmatpush1.msra.mxu0 %v137
    %157 = vmatprep.subr.mxu0 0.0
    %158 = vmatpush1.msra.mxu0 0.0
    %159 = vmatprep.subr.mxu0 0.0
    %160 = vmatpush1.msra.mxu0 0.0
    %161 = vmatprep.subr.mxu0 0.0
    %162 = vmatpush1.msra.mxu0 0.0
    %163 = vmatprep.subr.mxu0 0.0
    %164 = vmatpush1.msra.mxu0 0.0
    %165 = vmatprep.subr.mxu0 0.0
    %166 = vmatpush1.msra.mxu0 0.0
    %167 = vmatprep.subr.mxu0 0.0
    %168 = vmatpush1.msra.mxu0 0.0
    %169 = vmatprep.subr.mxu0 0.0
    %170 = vmatpush1.msra.mxu0 0.0
    %171 = vmatprep.subr.mxu0 0.0
    %172 = vmatpush1.msra.mxu0 0.0
    %173 = vmatprep.subr.mxu0 0.0
    %174 = vmatpush1.msra.mxu0 0.0
    %175 = vmatprep.subr.mxu0 0.0
    %176 = vmatpush1.msra.mxu0 0.0
    %177 = vmatprep.subr.mxu0 0.0
    %178 = vmatpush1.msra.mxu0 0.0
    %179 = vmatprep.subr.mxu0 0.0
    %180 = vmatpush1.msra.mxu0 0.0
    %181 = vmatprep.subr.mxu0 0.0
    %182 = vmatpush1.msra.mxu0 0.0
    %183 = vmatprep.subr.mxu0 0.0
    %184 = vmatpush1.msra.mxu0 0.0
    %185 = vmatprep.subr.mxu0 0.0
    %186 = vmatpush1.msra.mxu0 0.0
    %187 = vmatprep.subr.mxu0 0.0
    %188 = vmatpush1.msra.mxu0 0.0
    %189 = vmatprep.subr.mxu0 0.0
    %190 = vmatpush1.msra.mxu0 0.0
    %191 = vmatprep.subr.mxu0 0.0
    %192 = vmatpush1.msra.mxu0 0.0
    %193 = vmatprep.subr.mxu0 0.0
    %194 = vmatpush1.msra.mxu0 0.0
    %195 = vmatprep.subr.mxu0 0.0
    %196 = vmatpush1.msra.mxu0 0.0
    %197 = vmatprep.subr.mxu0 0.0
    %198 = vmatpush1.msra.mxu0 0.0
    %199 = vmatprep.subr.mxu0 0.0
    %200 = vmatpush1.msra.mxu0 0.0
    %201 = vmatprep.subr.mxu0 0.0
    %202 = vmatpush1.msra.mxu0 0.0
    %203 = vmatprep.subr.mxu0 0.0
    %204 = vmatpush1.msra.mxu0 0.0
    %205 = vmatprep.subr.mxu0 0.0
    %206 = vmatpush1.msra.mxu0 0.0
    %207 = vmatprep.subr.mxu0 0.0
    %208 = vmatpush1.msra.mxu0 0.0
    %209 = vmatprep.subr.mxu0 0.0
    %210 = vmatpush1.msra.mxu0 0.0
    %211 = vmatprep.subr.mxu0 0.0
    %212 = vmatpush1.msra.mxu0 0.0
    %213 = vmatprep.mubr.f32.mxu0 0.0
    %214 = vmatmul.mubr.f32.gmra.mrb[0].mxu0 %v147
    %v215 = vpop.f32.mrb[0].mxu0
    %v216 = vadd.f32 %v143, %v215
    %v217 = vpop.f32.mrb[0].mxu0
    %218 = vdwg.mxu0
    %vm219 = vcmask 123904
    %220 = vst.msk [vmem:[#allocation6] sm:$0x3] %vm219, %v216
    %v221 = vld [vmem:[%s10] sm:$0xff]
    %v222 = vld [vmem:[%s10 + $0x8] sm:$0xff]
    %v223 = vld [vmem:[%s6] sm:$0xff]
    %v224 = vld [vmem:[%s6 + $0x8] sm:$0xff]
    %v225 = vld [vmem:[%s7] sm:$0x1]
    %v226 = vld [vmem:[%s8] sm:$0xff]
    %v227 = vld [vmem:[%s8 + $0x8] sm:$0xff]
    %v228 = vld [vmem:[%s8 + $0x10] sm:$0xff]
    %v229 = vld [vmem:[%s8 + $0x18] sm:$0xff]
    %v230 = vld [vmem:[%s9] sm:$0x1]
    %v231 = vld [vmem:[%s1] sm:$0x3]
    %v232 = vadd.f32 %v216, %v231
    %v233 = vmul.f32 %v232, 2.0
    %vm234 = vcmask 58368
    %v235 = vsel %vm234, %v233, -inf
    %236 = vmax.xlane.f32.xlu0 %v235
    %v237 = vpop.xlane.xlu0 %236
    %v238 = vsub.f32 %v233, %v237
    %v239 = vmul.f32 %v238, 1.442695
    %v240 = vpow.pop %v239
    %v241 = vsel %vm234, %v240, 0.0
    %242 = vadd.xlane.f32.xlu0 %v241
    %v243 = vpop.xlane.xlu0 %242
    %v244 = vrcp.pop %v243
    %v245 = vmul.f32 %v240, %v244
    %vm246 = vcmask 123968
    %v247 = vsel %vm246, %v233, -inf
    %248 = vmax.xlane.f32.xlu0 %v247
    %v249 = vpop.xlane.xlu0 %248
    %v250 = vsub.f32 %v233, %v249
    %v251 = vmul.f32 %v250, 1.442695
    %v252 = vpow.pop %v251
    %254 = vrot.lane.b32.xlu0 %v252, 120
    %v255 = vpop.permute.xlu0 %254
    %v257 = vsel %vm234, %v255, 0.0
    %258 = vadd.xlane.f32.xlu0 %v257
    %v259 = vpop.xlane.xlu0 %258
    %v260 = vrcp.pop %v259
    %v261 = vmul.f32 %v252, %v260
    %vm262 = vcmask 64512
    %v263 = vsel %vm262, %v245, %v261
    %vm264 = vcmask 130048
    %v266 = vsel %vm264, %v263, 0
    %268 = vmatprep.subr.mxu0 0.0
    %269 = vmatpush1.msra.mxu0 %v221
    %270 = vmatprep.subr.mxu0 0.0
    %271 = vmatpush1.msra.mxu0 %v222
    %272 = vmatprep.subr.mxu0 0.0
    %273 = vmatpush1.msra.mxu0 0.0
    %274 = vmatprep.subr.mxu0 0.0
    %275 = vmatpush1.msra.mxu0 0.0
    %276 = vmatprep.subr.mxu0 0.0
    %277 = vmatpush1.msra.mxu0 0.0
    %278 = vmatprep.subr.mxu0 0.0
    %279 = vmatpush1.msra.mxu0 0.0
    %280 = vmatprep.subr.mxu0 0.0
    %281 = vmatpush1.msra.mxu0 0.0
    %282 = vmatprep.subr.mxu0 0.0
    %283 = vmatpush1.msra.mxu0 0.0
    %284 = vmatprep.subr.mxu0 0.0
    %285 = vmatpush1.msra.mxu0 0.0
    %286 = vmatprep.subr.mxu0 0.0
    %287 = vmatpush1.msra.mxu0 0.0
    %288 = vmatprep.subr.mxu0 0.0
    %289 = vmatpush1.msra.mxu0 0.0
    %290 = vmatprep.subr.mxu0 0.0
    %291 = vmatpush1.msra.mxu0 0.0
    %292 = vmatprep.subr.mxu0 0.0
    %293 = vmatpush1.msra.mxu0 0.0
    %294 = vmatprep.subr.mxu0 0.0
    %295 = vmatpush1.msra.mxu0 0.0
    %296 = vmatprep.subr.mxu0 0.0
    %297 = vmatpush1.msra.mxu0 0.0
    %298 = vmatprep.subr.mxu0 0.0
    %299 = vmatpush1.msra.mxu0 0.0
    %300 = vmatprep.subr.mxu0 0.0
    %301 = vmatpush1.msra.mxu0 0.0
    %302 = vmatprep.subr.mxu0 0.0
    %303 = vmatpush1.msra.mxu0 0.0
    %304 = vmatprep.subr.mxu0 0.0
    %305 = vmatpush1.msra.mxu0 0.0
    %306 = vmatprep.subr.mxu0 0.0
    %307 = vmatpush1.msra.mxu0 0.0
    %308 = vmatprep.subr.mxu0 0.0
    %309 = vmatpush1.msra.mxu0 0.0
    %310 = vmatprep.subr.mxu0 0.0
    %311 = vmatpush1.msra.mxu0 0.0
    %312 = vmatprep.subr.mxu0 0.0
    %313 = vmatpush1.msra.mxu0 0.0
    %314 = vmatprep.subr.mxu0 0.0
    %315 = vmatpush1.msra.mxu0 0.0
    %316 = vmatprep.subr.mxu0 0.0
    %317 = vmatpush1.msra.mxu0 0.0
    %318 = vmatprep.subr.mxu0 0.0
    %319 = vmatpush1.msra.mxu0 0.0
    %320 = vmatprep.subr.mxu0 0.0
    %321 = vmatpush1.msra.mxu0 0.0
    %322 = vmatprep.subr.mxu0 0.0
    %323 = vmatpush1.msra.mxu0 0.0
    %324 = vmatprep.subr.mxu0 0.0
    %325 = vmatpush1.msra.mxu0 0.0
    %326 = vmatprep.subr.mxu0 0.0
    %327 = vmatpush1.msra.mxu0 0.0
    %328 = vmatprep.subr.mxu0 0.0
    %329 = vmatpush1.msra.mxu0 0.0
    %330 = vmatprep.subr.mxu0 0.0
    %331 = vmatpush1.msra.mxu0 0.0
    %332 = vmatprep.mubr.f32.mxu0 0.0
    %333 = vmatmul.mubr.f32.gmra.mrb[0].mxu0 %v266
    %v334 = vpop.f32.mrb[0].mxu0
    %v335 = vadd.f32 0.0, %v334
    %v336 = vpop.f32.mrb[0].mxu0
    %337 = vdwg.mxu0
    %338 = vst.msk [vmem:[#allocation4] sm:$0x3] %vm219, %v335
    %v340 = vlaneseq
    %v341 = vshrl.u32 %v340, 7
    %v342 = vsub.s32 0, %v341
    %v343 = vrot.slane %v225, %v342
    %v346 = vsel %vm264, %v335, 0
    %348 = vmatprep.subr.mxu0 0.0
    %349 = vmatpush1.msra.mxu0 %v223
    %350 = vmatprep.subr.mxu0 0.0
    %351 = vmatpush1.msra.mxu0 %v224
    %352 = vmatprep.subr.mxu0 0.0
    %353 = vmatpush1.msra.mxu0 0.0
    %354 = vmatprep.subr.mxu0 0.0
    %355 = vmatpush1.msra.mxu0 0.0
    %356 = vmatprep.subr.mxu0 0.0
    %357 = vmatpush1.msra.mxu0 0.0
    %358 = vmatprep.subr.mxu0 0.0
    %359 = vmatpush1.msra.mxu0 0.0
    %360 = vmatprep.subr.mxu0 0.0
    %361 = vmatpush1.msra.mxu0 0.0
    %362 = vmatprep.subr.mxu0 0.0
    %363 = vmatpush1.msra.mxu0 0.0
    %364 = vmatprep.subr.mxu0 0.0
    %365 = vmatpush1.msra.mxu0 0.0
    %366 = vmatprep.subr.mxu0 0.0
    %367 = vmatpush1.msra.mxu0 0.0
    %368 = vmatprep.subr.mxu0 0.0
    %369 = vmatpush1.msra.mxu0 0.0
    %370 = vmatprep.subr.mxu0 0.0
    %371 = vmatpush1.msra.mxu0 0.0
    %372 = vmatprep.subr.mxu0 0.0
    %373 = vmatpush1.msra.mxu0 0.0
    %374 = vmatprep.subr.mxu0 0.0
    %375 = vmatpush1.msra.mxu0 0.0
    %376 = vmatprep.subr.mxu0 0.0
    %377 = vmatpush1.msra.mxu0 0.0
    %378 = vmatprep.subr.mxu0 0.0
    %379 = vmatpush1.msra.mxu0 0.0
    %380 = vmatprep.subr.mxu0 0.0
    %381 = vmatpush1.msra.mxu0 0.0
    %382 = vmatprep.subr.mxu0 0.0
    %383 = vmatpush1.msra.mxu0 0.0
    %384 = vmatprep.subr.mxu0 0.0
    %385 = vmatpush1.msra.mxu0 0.0
    %386 = vmatprep.subr.mxu0 0.0
    %387 = vmatpush1.msra.mxu0 0.0
    %388 = vmatprep.subr.mxu0 0.0
    %389 = vmatpush1.msra.mxu0 0.0
    %390 = vmatprep.subr.mxu0 0.0
    %391 = vmatpush1.msra.mxu0 0.0
    %392 = vmatprep.subr.mxu0 0.0
    %393 = vmatpush1.msra.mxu0 0.0
    %394 = vmatprep.subr.mxu0 0.0
    %395 = vmatpush1.msra.mxu0 0.0
    %396 = vmatprep.subr.mxu0 0.0
    %397 = vmatpush1.msra.mxu0 0.0
    %398 = vmatprep.subr.mxu0 0.0
    %399 = vmatpush1.msra.mxu0 0.0
    %400 = vmatprep.subr.mxu0 0.0
    %401 = vmatpush1.msra.mxu0 0.0
    %402 = vmatprep.subr.mxu0 0.0
    %403 = vmatpush1.msra.mxu0 0.0
    %404 = vmatprep.subr.mxu0 0.0
    %405 = vmatpush1.msra.mxu0 0.0
    %406 = vmatprep.subr.mxu0 0.0
    %407 = vmatpush1.msra.mxu0 0.0
    %408 = vmatprep.subr.mxu0 0.0
    %409 = vmatpush1.msra.mxu0 0.0
    %410 = vmatprep.subr.mxu0 0.0
    %411 = vmatpush1.msra.mxu0 0.0
    %412 = vmatprep.mubr.f32.mxu0 0.0
    %413 = vmatmul.mubr.f32.gmra.mrb[0].mxu0 %v346
    %v414 = vpop.f32.mrb[0].mxu0
    %v415 = vadd.f32 %v343, %v414
    %v416 = vpop.f32.mrb[0].mxu0
    %417 = vdwg.mxu0
    %v418 = vmax.f32 %v415, 0.0
    %v420 = vlaneseq
    %v421 = vshrl.u32 %v420, 7
    %v422 = vsub.s32 0, %v421
    %v423 = vrot.slane %v230, %v422
    %v426 = vsel %vm145, %v418, 0
    %428 = vmatprep.subr.mxu0 0.0
    %429 = vmatpush1.msra.mxu0 %v226
    %430 = vmatprep.subr.mxu0 0.0
    %431 = vmatpush1.msra.mxu0 %v227
    %432 = vmatprep.subr.mxu0 0.0
    %433 = vmatpush1.msra.mxu0 %v228
    %434 = vmatprep.subr.mxu0 0.0
    %435 = vmatpush1.msra.mxu0 %v229
    %436 = vmatprep.subr.mxu0 0.0
    %437 = vmatpush1.msra.mxu0 0.0
    %438 = vmatprep.subr.mxu0 0.0
    %439 = vmatpush1.msra.mxu0 0.0
    %440 = vmatprep.subr.mxu0 0.0
    %441 = vmatpush1.msra.mxu0 0.0
    %442 = vmatprep.subr.mxu0 0.0
    %443 = vmatpush1.msra.mxu0 0.0
    %444 = vmatprep.subr.mxu0 0.0
    %445 = vmatpush1.msra.mxu0 0.0
    %446 = vmatprep.subr.mxu0 0.0
    %447 = vmatpush1.msra.mxu0 0.0
    %448 = vmatprep.subr.mxu0 0.0
    %449 = vmatpush1.msra.mxu0 0.0
    %450 = vmatprep.subr.mxu0 0.0
    %451 = vmatpush1.msra.mxu0 0.0
    %452 = vmatprep.subr.mxu0 0.0
    %453 = vmatpush1.msra.mxu0 0.0
    %454 = vmatprep.subr.mxu0 0.0
    %455 = vmatpush1.msra.mxu0 0.0
    %456 = vmatprep.subr.mxu0 0.0
    %457 = vmatpush1.msra.mxu0 0.0
    %458 = vmatprep.subr.mxu0 0.0
    %459 = vmatpush1.msra.mxu0 0.0
    %460 = vmatprep.subr.mxu0 0.0
    %461 = vmatpush1.msra.mxu0 0.0
    %462 = vmatprep.subr.mxu0 0.0
    %463 = vmatpush1.msra.mxu0 0.0
    %464 = vmatprep.subr.mxu0 0.0
    %465 = vmatpush1.msra.mxu0 0.0
    %466 = vmatprep.subr.mxu0 0.0
    %467 = vmatpush1.msra.mxu0 0.0
    %468 = vmatprep.subr.mxu0 0.0
    %469 = vmatpush1.msra.mxu0 0.0
    %470 = vmatprep.subr.mxu0 0.0
    %471 = vmatpush1.msra.mxu0 0.0
    %472 = vmatprep.subr.mxu0 0.0
    %473 = vmatpush1.msra.mxu0 0.0
    %474 = vmatprep.subr.mxu0 0.0
    %475 = vmatpush1.msra.mxu0 0.0
    %476 = vmatprep.subr.mxu0 0.0
    %477 = vmatpush1.msra.mxu0 0.0
    %478 = vmatprep.subr.mxu0 0.0
    %479 = vmatpush1.msra.mxu0 0.0
    %480 = vmatprep.subr.mxu0 0.0
    %481 = vmatpush1.msra.mxu0 0.0
    %482 = vmatprep.subr.mxu0 0.0
    %483 = vmatpush1.msra.mxu0 0.0
    %484 = vmatprep.subr.mxu0 0.0
    %485 = vmatpush1.msra.mxu0 0.0
    %486 = vmatprep.subr.mxu0 0.0
    %487 = vmatpush1.msra.mxu0 0.0
    %488 = vmatprep.subr.mxu0 0.0
    %489 = vmatpush1.msra.mxu0 0.0
    %490 = vmatprep.subr.mxu0 0.0
    %491 = vmatpush1.msra.mxu0 0.0
    %492 = vmatprep.mubr.f32.mxu0 0.0
    %493 = vmatmul.mubr.f32.gmra.mrb[0].mxu0 %v426
    %v494 = vpop.f32.mrb[0].mxu0
    %v495 = vadd.f32 %v423, %v494
    %v496 = vpop.f32.mrb[0].mxu0
    %497 = vdwg.mxu0
    %v498 = vxor.u32 %v495, 2147483648
    %v499 = vmul.f32 %v498, 1.442695
    %v500 = vpow.pop %v499
    %v501 = vadd.f32 %v500, 1.0
    %v502 = vrcp.pop %v501
    %v503 = vmul.f32 1.0, %v502
    %vm504 = vcmask 517120
    %505 = vst.msk [vmem:[#allocation2] sm:$0x3] %vm504, %v503
    %s506 = scalar_lea.vmem %s1, 2
    %v507 = vld [vmem:[%s506] sm:$0x3]
    %v508 = vadd.f32 %v216, %v507
    %v509 = vmul.f32 %v508, 2.0
    %v510 = vsel %vm234, %v509, -inf
    %511 = vmax.xlane.f32.xlu0 %v510
    %v512 = vpop.xlane.xlu0 %511
    %v513 = vsub.f32 %v509, %v512
    %v514 = vmul.f32 %v513, 1.442695
    %v515 = vpow.pop %v514
    %v516 = vsel %vm234, %v515, 0.0
    %517 = vadd.xlane.f32.xlu0 %v516
    %v518 = vpop.xlane.xlu0 %517
    %v519 = vrcp.pop %v518
    %v520 = vmul.f32 %v515, %v519
    %v521 = vsel %vm246, %v509, -inf
    %522 = vmax.xlane.f32.xlu0 %v521
    %v523 = vpop.xlane.xlu0 %522
    %v524 = vsub.f32 %v509, %v523
    %v525 = vmul.f32 %v524, 1.442695
    %v526 = vpow.pop %v525
    %528 = vrot.lane.b32.xlu0 %v526, 120
    %v529 = vpop.permute.xlu0 %528
    %v531 = vsel %vm234, %v529, 0.0
    %532 = vadd.xlane.f32.xlu0 %v531
    %v533 = vpop.xlane.xlu0 %532
    %v534 = vrcp.pop %v533
    %v535 = vmul.f32 %v526, %v534
    %v536 = vsel %vm262, %v520, %v535
    %v538 = vsel %vm264, %v536, 0
    %540 = vmatprep.subr.mxu0 0.0
    %541 = vmatpush1.msra.mxu0 %v221
    %542 = vmatprep.subr.mxu0 0.0
    %543 = vmatpush1.msra.mxu0 %v222
    %544 = vmatprep.subr.mxu0 0.0
    %545 = vmatpush1.msra.mxu0 0.0
    %546 = vmatprep.subr.mxu0 0.0
    %547 = vmatpush1.msra.mxu0 0.0
    %548 = vmatprep.subr.mxu0 0.0
    %549 = vmatpush1.msra.mxu0 0.0
    %550 = vmatprep.subr.mxu0 0.0
    %551 = vmatpush1.msra.mxu0 0.0
    %552 = vmatprep.subr.mxu0 0.0
    %553 = vmatpush1.msra.mxu0 0.0
    %554 = vmatprep.subr.mxu0 0.0
    %555 = vmatpush1.msra.mxu0 0.0
    %556 = vmatprep.subr.mxu0 0.0
    %557 = vmatpush1.msra.mxu0 0.0
    %558 = vmatprep.subr.mxu0 0.0
    %559 = vmatpush1.msra.mxu0 0.0
    %560 = vmatprep.subr.mxu0 0.0
    %561 = vmatpush1.msra.mxu0 0.0
    %562 = vmatprep.subr.mxu0 0.0
    %563 = vmatpush1.msra.mxu0 0.0
    %564 = vmatprep.subr.mxu0 0.0
    %565 = vmatpush1.msra.mxu0 0.0
    %566 = vmatprep.subr.mxu0 0.0
    %567 = vmatpush1.msra.mxu0 0.0
    %568 = vmatprep.subr.mxu0 0.0
    %569 = vmatpush1.msra.mxu0 0.0
    %570 = vmatprep.subr.mxu0 0.0
    %571 = vmatpush1.msra.mxu0 0.0
    %572 = vmatprep.subr.mxu0 0.0
    %573 = vmatpush1.msra.mxu0 0.0
    %574 = vmatprep.subr.mxu0 0.0
    %575 = vmatpush1.msra.mxu0 0.0
    %576 = vmatprep.subr.mxu0 0.0
    %577 = vmatpush1.msra.mxu0 0.0
    %578 = vmatprep.subr.mxu0 0.0
    %579 = vmatpush1.msra.mxu0 0.0
    %580 = vmatprep.subr.mxu0 0.0
    %581 = vmatpush1.msra.mxu0 0.0
    %582 = vmatprep.subr.mxu0 0.0
    %583 = vmatpush1.msra.mxu0 0.0
    %584 = vmatprep.subr.mxu0 0.0
    %585 = vmatpush1.msra.mxu0 0.0
    %586 = vmatprep.subr.mxu0 0.0
    %587 = vmatpush1.msra.mxu0 0.0
    %588 = vmatprep.subr.mxu0 0.0
    %589 = vmatpush1.msra.mxu0 0.0
    %590 = vmatprep.subr.mxu0 0.0
    %591 = vmatpush1.msra.mxu0 0.0
    %592 = vmatprep.subr.mxu0 0.0
    %593 = vmatpush1.msra.mxu0 0.0
    %594 = vmatprep.subr.mxu0 0.0
    %595 = vmatpush1.msra.mxu0 0.0
    %596 = vmatprep.subr.mxu0 0.0
    %597 = vmatpush1.msra.mxu0 0.0
    %598 = vmatprep.subr.mxu0 0.0
    %599 = vmatpush1.msra.mxu0 0.0
    %600 = vmatprep.subr.mxu0 0.0
    %601 = vmatpush1.msra.mxu0 0.0
    %602 = vmatprep.subr.mxu0 0.0
    %603 = vmatpush1.msra.mxu0 0.0
    %604 = vmatprep.mubr.f32.mxu0 0.0
    %605 = vmatmul.mubr.f32.gmra.mrb[0].mxu0 %v538
    %v606 = vpop.f32.mrb[0].mxu0
    %v607 = vadd.f32 0.0, %v606
    %v608 = vpop.f32.mrb[0].mxu0
    %609 = vdwg.mxu0
    %s610 = scalar_lea.vmem [#allocation4], 2
    %611 = vst.msk [vmem:[%s610] sm:$0x3] %vm219, %v607
    %v613 = vsel %vm264, %v607, 0
    %615 = vmatprep.subr.mxu0 0.0
    %616 = vmatpush1.msra.mxu0 %v223
    %617 = vmatprep.subr.mxu0 0.0
    %618 = vmatpush1.msra.mxu0 %v224
    %619 = vmatprep.subr.mxu0 0.0
    %620 = vmatpush1.msra.mxu0 0.0
    %621 = vmatprep.subr.mxu0 0.0
    %622 = vmatpush1.msra.mxu0 0.0
    %623 = vmatprep.subr.mxu0 0.0
    %624 = vmatpush1.msra.mxu0 0.0
    %625 = vmatprep.subr.mxu0 0.0
    %626 = vmatpush1.msra.mxu0 0.0
    %627 = vmatprep.subr.mxu0 0.0
    %628 = vmatpush1.msra.mxu0 0.0
    %629 = vmatprep.subr.mxu0 0.0
    %630 = vmatpush1.msra.mxu0 0.0
    %631 = vmatprep.subr.mxu0 0.0
    %632 = vmatpush1.msra.mxu0 0.0
    %633 = vmatprep.subr.mxu0 0.0
    %634 = vmatpush1.msra.mxu0 0.0
    %635 = vmatprep.subr.mxu0 0.0
    %636 = vmatpush1.msra.mxu0 0.0
    %637 = vmatprep.subr.mxu0 0.0
    %638 = vmatpush1.msra.mxu0 0.0
    %639 = vmatprep.subr.mxu0 0.0
    %640 = vmatpush1.msra.mxu0 0.0
    %641 = vmatprep.subr.mxu0 0.0
    %642 = vmatpush1.msra.mxu0 0.0
    %643 = vmatprep.subr.mxu0 0.0
    %644 = vmatpush1.msra.mxu0 0.0
    %645 = vmatprep.subr.mxu0 0.0
    %646 = vmatpush1.msra.mxu0 0.0
    %647 = vmatprep.subr.mxu0 0.0
    %648 = vmatpush1.msra.mxu0 0.0
    %649 = vmatprep.subr.mxu0 0.0
    %650 = vmatpush1.msra.mxu0 0.0
    %651 = vmatprep.subr.mxu0 0.0
    %652 = vmatpush1.msra.mxu0 0.0
    %653 = vmatprep.subr.mxu0 0.0
    %654 = vmatpush1.msra.mxu0 0.0
    %655 = vmatprep.subr.mxu0 0.0
    %656 = vmatpush1.msra.mxu0 0.0
    %657 = vmatprep.subr.mxu0 0.0
    %658 = vmatpush1.msra.mxu0 0.0
    %659 = vmatprep.subr.mxu0 0.0
    %660 = vmatpush1.msra.mxu0 0.0
    %661 = vmatprep.subr.mxu0 0.0
    %662 = vmatpush1.msra.mxu0 0.0
    %663 = vmatprep.subr.mxu0 0.0
    %664 = vmatpush1.msra.mxu0 0.0
    %665 = vmatprep.subr.mxu0 0.0
    %666 = vmatpush1.msra.mxu0 0.0
    %667 = vmatprep.subr.mxu0 0.0
    %668 = vmatpush1.msra.mxu0 0.0
    %669 = vmatprep.subr.mxu0 0.0
    %670 = vmatpush1.msra.mxu0 0.0
    %671 = vmatprep.subr.mxu0 0.0
    %672 = vmatpush1.msra.mxu0 0.0
    %673 = vmatprep.subr.mxu0 0.0
    %674 = vmatpush1.msra.mxu0 0.0
    %675 = vmatprep.subr.mxu0 0.0
    %676 = vmatpush1.msra.mxu0 0.0
    %677 = vmatprep.subr.mxu0 0.0
    %678 = vmatpush1.msra.mxu0 0.0
    %679 = vmatprep.mubr.f32.mxu0 0.0
    %680 = vmatmul.mubr.f32.gmra.mrb[0].mxu0 %v613
    %v681 = vpop.f32.mrb[0].mxu0
    %v682 = vadd.f32 %v343, %v681
    %v683 = vpop.f32.mrb[0].mxu0
    %684 = vdwg.mxu0
    %v685 = vmax.f32 %v682, 0.0
    %v687 = vsel %vm145, %v685, 0
    %689 = vmatprep.subr.mxu0 0.0
    %690 = vmatpush1.msra.mxu0 %v226
    %691 = vmatprep.subr.mxu0 0.0
    %692 = vmatpush1.msra.mxu0 %v227
    %693 = vmatprep.subr.mxu0 0.0
    %694 = vmatpush1.msra.mxu0 %v228
    %695 = vmatprep.subr.mxu0 0.0
    %696 = vmatpush1.msra.mxu0 %v229
    %697 = vmatprep.subr.mxu0 0.0
    %698 = vmatpush1.msra.mxu0 0.0
    %699 = vmatprep.subr.mxu0 0.0
    %700 = vmatpush1.msra.mxu0 0.0
    %701 = vmatprep.subr.mxu0 0.0
    %702 = vmatpush1.msra.mxu0 0.0
    %703 = vmatprep.subr.mxu0 0.0
    %704 = vmatpush1.msra.mxu0 0.0
    %705 = vmatprep.subr.mxu0 0.0
    %706 = vmatpush1.msra.mxu0 0.0
    %707 = vmatprep.subr.mxu0 0.0
    %708 = vmatpush1.msra.mxu0 0.0
    %709 = vmatprep.subr.mxu0 0.0
    %710 = vmatpush1.msra.mxu0 0.0
    %711 = vmatprep.subr.mxu0 0.0
    %712 = vmatpush1.msra.mxu0 0.0
    %713 = vmatprep.subr.mxu0 0.0
    %714 = vmatpush1.msra.mxu0 0.0
    %715 = vmatprep.subr.mxu0 0.0
    %716 = vmatpush1.msra.mxu0 0.0
    %717 = vmatprep.subr.mxu0 0.0
    %718 = vmatpush1.msra.mxu0 0.0
    %719 = vmatprep.subr.mxu0 0.0
    %720 = vmatpush1.msra.mxu0 0.0
    %721 = vmatprep.subr.mxu0 0.0
    %722 = vmatpush1.msra.mxu0 0.0
    %723 = vmatprep.subr.mxu0 0.0
    %724 = vmatpush1.msra.mxu0 0.0
    %725 = vmatprep.subr.mxu0 0.0
    %726 = vmatpush1.msra.mxu0 0.0
    %727 = vmatprep.subr.mxu0 0.0
    %728 = vmatpush1.msra.mxu0 0.0
    %729 = vmatprep.subr.mxu0 0.0
    %730 = vmatpush1.msra.mxu0 0.0
    %731 = vmatprep.subr.mxu0 0.0
    %732 = vmatpush1.msra.mxu0 0.0
    %733 = vmatprep.subr.mxu0 0.0
    %734 = vmatpush1.msra.mxu0 0.0
    %735 = vmatprep.subr.mxu0 0.0
    %736 = vmatpush1.msra.mxu0 0.0
    %737 = vmatprep.subr.mxu0 0.0
    %738 = vmatpush1.msra.mxu0 0.0
    %739 = vmatprep.subr.mxu0 0.0
    %740 = vmatpush1.msra.mxu0 0.0
    %741 = vmatprep.subr.mxu0 0.0
    %742 = vmatpush1.msra.mxu0 0.0
    %743 = vmatprep.subr.mxu0 0.0
    %744 = vmatpush1.msra.mxu0 0.0
    %745 = vmatprep.subr.mxu0 0.0
    %746 = vmatpush1.msra.mxu0 0.0
    %747 = vmatprep.subr.mxu0 0.0
    %748 = vmatpush1.msra.mxu0 0.0
    %749 = vmatprep.subr.mxu0 0.0
    %750 = vmatpush1.msra.mxu0 0.0
    %751 = vmatprep.subr.mxu0 0.0
    %752 = vmatpush1.msra.mxu0 0.0
    %753 = vmatprep.mubr.f32.mxu0 0.0
    %754 = vmatmul.mubr.f32.gmra.mrb[0].mxu0 %v687
    %v755 = vpop.f32.mrb[0].mxu0
    %v756 = vadd.f32 %v423, %v755
    %v757 = vpop.f32.mrb[0].mxu0
    %758 = vdwg.mxu0
    %v759 = vxor.u32 %v756, 2147483648
    %v760 = vmul.f32 %v759, 1.442695
    %v761 = vpow.pop %v760
    %v762 = vadd.f32 %v761, 1.0
    %v763 = vrcp.pop %v762
    %v764 = vmul.f32 1.0, %v763
    %s765 = scalar_lea.vmem [#allocation2], 2
    %766 = vst.msk [vmem:[%s765] sm:$0x3] %vm504, %v764
    // Predicated region
    $region46: #{tpu_custom_call.1} parent=1 // pred_check
      _
    $region47: #{tpu_custom_call.1} parent=1 // pred_check_branch
      %768 = sbr.rel (0) target = $region49
    $region48: #{tpu_custom_call.1} parent=1 // pred_region
      %s770 = ssub.s32 64, 64
      %771 = vsyncadd [#allocation3], %s770
      %s772 = sshll.u32 [#allocation2], 4
      %s773 = int_to_ptr.vmem [resolvable:$true] %s772
      %778 = dma.vmem_to_hbm [thread:$0]  %s773, 64, %s11, [#allocation3], 32, 32, 2
    $region49: #{tpu_custom_call.1} parent=1 // pred_fallthru
      _
    // Predicated region
    $region50: #{tpu_custom_call.1} parent=1 // pred_check
      _
    $region51: #{tpu_custom_call.1} parent=1 // pred_check_branch
      %780 = sbr.rel (0) target = $region53
    $region52: #{tpu_custom_call.1} parent=1 // pred_region
      %s782 = ssub.s32 64, 64
      %783 = vsyncadd [#allocation5], %s782
      %s784 = sshll.u32 [#allocation4], 4
      %s785 = int_to_ptr.vmem [resolvable:$true] %s784
      %790 = dma.vmem_to_hbm [thread:$0]  %s785, 64, %s12, [#allocation5], 32, 32, 2
    $region53: #{tpu_custom_call.1} parent=1 // pred_fallthru
      _
    // Predicated region
    $region54: #{tpu_custom_call.1} parent=1 // pred_check
      _
    $region55: #{tpu_custom_call.1} parent=1 // pred_check_branch
      %792 = sbr.rel (0) target = $region57
    $region56: #{tpu_custom_call.1} parent=1 // pred_region
      %s794 = ssub.s32 32, 32
      %795 = vsyncadd [#allocation5], %s794
      %s797 = sshll.u32 [#allocation6], 4
      %s798 = int_to_ptr.vmem [resolvable:$true] %s797
      %800 = dma.vmem_to_hbm [thread:$0]  %s798, 32, %s13, [#allocation5]
    $region57: #{tpu_custom_call.1} parent=1 // pred_fallthru
      _
    // Predicated region
    $region58: #{tpu_custom_call.1} parent=1 // pred_check
      _
    $region59: #{tpu_custom_call.1} parent=1 // pred_check_branch
      %802 = sbr.rel (0) target = $region61
    $region60: #{tpu_custom_call.1} parent=1 // pred_region
      %803 = dma.done [#allocation3], 64
    $region61: #{tpu_custom_call.1} parent=1 // pred_fallthru
      _
    // Predicated region
    $region62: #{tpu_custom_call.1} parent=1 // pred_check
      _
    $region63: #{tpu_custom_call.1} parent=1 // pred_check_branch
      %805 = sbr.rel (0) target = $region65
    $region64: #{tpu_custom_call.1} parent=1 // pred_region
      %806 = dma.done [#allocation5], 64
    $region65: #{tpu_custom_call.1} parent=1 // pred_fallthru
      _
    // Predicated region
    $region66: #{tpu_custom_call.1} parent=1 // pred_check
      _
    $region67: #{tpu_custom_call.1} parent=1 // pred_check_branch
      %808 = sbr.rel (0) target = $region69
    $region68: #{tpu_custom_call.1} parent=1 // pred_region
      %809 = dma.done [#allocation5], 32
    $region69: #{tpu_custom_call.1} parent=1 // pred_fallthru
      _
    %810 = vsyncpa [#allocation3], 1
    %811 = vsyncpa [#allocation5], 1

</llo_original>
